<compile_context>
chip_gen: v6e
topology: v6e:2x2x1
jax: 0.10.0
libtpu: 0.0.40
codegen_flags: <defaults>
</compile_context>

<pallas_src>
import functools
import math

import jax
import jax.numpy as jnp
from jax.experimental import pallas as pl
from jax.experimental.pallas import tpu as pltpu


def _round_up(x, m):
    return ((x + m - 1) // m) * m


# -----------------------------------------------------------------------------------------------
# Kernels
# -----------------------------------------------------------------------------------------------
def _ffn_kernel_acc_out(x_ref, w1_ref, b1_ref, w2_ref, b2_ref, o_ref):
    """f32-output variant: accumulate GEMM2 partials directly into the resident o_ref block."""
    k = pl.program_id(1)

    @pl.when(k == 0)
    def _():
        o_ref[...] = jnp.broadcast_to(b2_ref[...], o_ref.shape)

    h = jnp.dot(x_ref[...], w1_ref[...], preferred_element_type=jnp.float32) + b1_ref[...]
    h = jnp.maximum(h, 0.0)
    # Dropout(p=0.0) is the identity (eval semantics).
    # TODO(synk): training-mode dropout (p > 0) would use pltpu.prng_seed/prng_random_bits.
    o_ref[...] += jnp.dot(h.astype(w2_ref.dtype), w2_ref[...],
                          preferred_element_type=jnp.float32)


def _ffn_kernel_acc_scratch(x_ref, w1_ref, b1_ref, w2_ref, b2_ref, o_ref, acc_ref):
    """Narrow-output variant: f32 scratch accumulator, cast once on the last hidden tile."""
    k = pl.program_id(1)

    @pl.when(k == 0)
    def _():
        acc_ref[...] = jnp.broadcast_to(b2_ref[...], acc_ref.shape)

    h = jnp.dot(x_ref[...], w1_ref[...], preferred_element_type=jnp.float32) + b1_ref[...]
    h = jnp.maximum(h, 0.0)
    acc_ref[...] += jnp.dot(h.astype(w2_ref.dtype), w2_ref[...],
                            preferred_element_type=jnp.float32)

    @pl.when(k == pl.num_programs(1) - 1)
    def _():
        o_ref[...] = acc_ref[...].astype(o_ref.dtype)


# -----------------------------------------------------------------------------------------------
# Hardware detection (trace-time; cached)
# -----------------------------------------------------------------------------------------------
@functools.lru_cache(maxsize=1)
def _tpu_hw():
    kind = ""
    try:
        kind = jax.devices()[0].device_kind.lower()
    except Exception:  # pragma: no cover - non-TPU fallback
        pass
    vmem_cap = None
    try:
        info = pltpu.get_tpu_info()
        cap = int(getattr(info, "vmem_capacity_bytes", 0))
        vmem_cap = cap if cap > 0 else None
    except Exception:  # pragma: no cover - older jax / non-TPU fallback
        vmem_cap = None
    if vmem_cap is None:
        # Conservative per-TensorCore capacities: v7x = 64 MiB, v5e/v6e = 128 MiB.
        vmem_cap = (64 << 20) if "v7" in kind else (128 << 20)
    return kind, vmem_cap


def _default_tiles(kind):
    if "v7" in kind:   # 64 MiB VMEM/TC, 2 TCs
        return 512, 512
    if "v6" in kind:   # 128 MiB VMEM, big tiles quarter weight re-streaming
        return 1024, 1024
    if "v5" in kind:   # single vst slot -> fewer accumulator RMW passes (large tk)
        return 512, 1024
    return 512, 512


# -----------------------------------------------------------------------------------------------
# Wrapper
# -----------------------------------------------------------------------------------------------
@functools.partial(jax.jit, static_argnames=("block_m", "block_k", "compute_dtype"))
def feed_forward(x, w1, b1, w2, b2, *, block_m=None, block_k=None,
                 compute_dtype=jnp.bfloat16):
    """y = relu(x @ W1 + b1) @ W2 + b2   (Dropout(0) == identity).

    x: (..., dim); w1: (dim, hidden); b1: (hidden,); w2: (hidden, dim); b2: (dim,).
    Weights are stored (in, out) so the kernel computes x @ W directly.
    compute_dtype: MXU input precision (default bf16; accumulation is always f32).
    Pre-padded / pre-cast weights (see prepare_params) pass through with no extra copies.
    """
    orig_dtype = x.dtype
    *lead, dim = x.shape
    hidden = w1.shape[1]
    M = int(math.prod(lead)) if lead else 1
    x2 = x.reshape(M, dim)

    kind, vmem_cap = _tpu_hw()
    dm, dk = _default_tiles(kind)
    block_m = dm if block_m is None else block_m
    block_k = dk if block_k is None else block_k

    mm_dtype = jnp.dtype(compute_dtype) if compute_dtype is not None else x2.dtype
    bd = mm_dtype.itemsize
    od = jnp.dtype(orig_dtype).itemsize
    direct_acc = jnp.dtype(orig_dtype) == jnp.dtype(jnp.float32)

    # Sublane multiple for the matmul dtype (f32: 8, bf16: 16, int8/fp8: 32).
    sub = {4: 8, 2: 16, 1: 32}.get(bd, 8)

    # --- Lane-dense feature dims: pad dim / hidden to multiples of 128 (exact for this FFN). ---
    dim_p = _round_up(dim, 128)
    tm = max(sub, min(_round_up(block_m, sub), _round_up(M, sub)))
    tk = max(128, min(_round_up(block_k, 128), _round_up(hidden, 128)))

    # --- Shrink-to-fit against this generation's per-TensorCore VMEM. --------------------------
    budget = int(0.85 * vmem_cap) - (2 << 20)

    def vmem_needed(tm_, tk_):
        return (2 * tm_ * dim_p * bd                       # x tiles (double-buffered)
                + 2 * tm_ * dim_p * od                     # out tiles
                + 2 * dim_p * tk_ * bd                     # W1 tiles
                + 2 * tk_ * dim_p * bd                     # W2 tiles
                + 2 * 8 * tk_ * 4 + 2 * 8 * dim_p * 4      # biases (sublane-padded)
                + (0 if direct_acc else tm_ * dim_p * 4)   # f32 accumulator scratch
                + tm_ * tk_ * 4)                           # h intermediate

    # Shrink tk first (only adds k steps); shrinking tm multiplies weight re-streaming from HBM.
    while vmem_needed(tm, tk) > budget and tk > 128:
        tk = max(128, _round_up(tk // 2, 128))
    while vmem_needed(tm, tk) > budget and tm > sub:
        tm = max(sub, _round_up(tm // 2, sub))

    hidden_p = _round_up(hidden, tk)
    grid_k = hidden_p // tk
    grid_m = pl.cdiv(M, tm)

    # v7x: the "parallel" M axis shards across 2 TensorCores; keep both fed when M allows.
    if "v7" in kind and grid_m == 1 and M > sub:
        tm = max(sub, _round_up(-(-M // 2), sub))
        grid_m = pl.cdiv(M, tm)

    # --- Padding / casting (guarded: no-ops when inputs are already padded / in mm_dtype). ------
    if dim_p != dim:
        x2 = jnp.pad(x2, ((0, 0), (0, dim_p - dim)))
    w1p = w1 if (dim_p == dim and hidden_p == hidden) else jnp.pad(
        w1, ((0, dim_p - dim), (0, hidden_p - hidden)))
    w2p = w2 if (dim_p == dim and hidden_p == hidden) else jnp.pad(
        w2, ((0, hidden_p - hidden), (0, dim_p - dim)))
    b1p = b1 if hidden_p == hidden else jnp.pad(b1, ((0, hidden_p - hidden),))
    b2p = b2 if dim_p == dim else jnp.pad(b2, ((0, dim_p - dim),))
    b1p = b1p.reshape(1, hidden_p).astype(jnp.float32)
    b2p = b2p.reshape(1, dim_p).astype(jnp.float32)

    if x2.dtype != mm_dtype:
        x2 = x2.astype(mm_dtype)
    if w1p.dtype != mm_dtype:
        w1p = w1p.astype(mm_dtype)
    if w2p.dtype != mm_dtype:
        w2p = w2p.astype(mm_dtype)

    # --- VMEM limit (generation-aware cap) and cost estimate (real weight re-streaming). --------
    need = vmem_needed(tm, tk)
    vmem_limit = int(min(max(int(need * 1.2) + (2 << 20), 32 << 20), int(0.85 * vmem_cap)))

    w_bytes = (w1p.size + w2p.size) * bd
    cost = pl.CostEstimate(
        flops=4 * M * dim_p * hidden_p,
        transcendentals=0,
        bytes_accessed=int(x2.size * bd + M * dim_p * od
                           + grid_m * w_bytes
                           + grid_m * (b1p.size + b2p.size) * 4),
    )

    kernel = _ffn_kernel_acc_out if direct_acc else _ffn_kernel_acc_scratch
    scratch = [] if direct_acc else [pltpu.VMEM((tm, dim_p), jnp.float32)]

    out = pl.pallas_call(
        kernel,
        out_shape=jax.ShapeDtypeStruct((M, dim_p), orig_dtype),
        grid_spec=pltpu.PrefetchScalarGridSpec(
            num_scalar_prefetch=0,
            grid=(grid_m, grid_k),
            in_specs=[
                pl.BlockSpec((tm, dim_p), lambda i, k: (i, 0)),   # x row tile
                pl.BlockSpec((dim_p, tk), lambda i, k: (0, k)),   # W1 hidden tile
                pl.BlockSpec((1, tk), lambda i, k: (0, k)),       # b1 hidden tile
                pl.BlockSpec((tk, dim_p), lambda i, k: (k, 0)),   # W2 hidden tile
                pl.BlockSpec((1, dim_p), lambda i, k: (0, 0)),    # b2 (resident)
            ],
            out_specs=pl.BlockSpec((tm, dim_p), lambda i, k: (i, 0)),
            scratch_shapes=scratch,
        ),
        compiler_params=pltpu.CompilerParams(
            dimension_semantics=("parallel", "arbitrary"),
            vmem_limit_bytes=vmem_limit,
        ),
        cost_estimate=cost,
    )(x2, w1p, b1p, w2p, b2p)

    if dim_p != dim:
        out = out[:, :dim]
    return out.reshape(*lead, dim)


def prepare_params(w1, b1, w2, b2, compute_dtype=jnp.bfloat16):
    """One-time weight cast to the MXU input dtype (biases stay f32 for the epilogue).

    Doing this once outside the per-call path avoids re-reading/writing the full weight set
    on every forward call just for the dtype conversion.
    """
    mm = jnp.dtype(compute_dtype)
    return (w1.astype(mm), b1.astype(jnp.float32),
            w2.astype(mm), b2.astype(jnp.float32))


def init_params(key, dim, hidden_dim, dtype=jnp.float32):
    """Deterministic init mirroring nn.Linear's uniform(-1/sqrt(fan_in), 1/sqrt(fan_in))."""
    k1, k2, k3, k4 = jax.random.split(key, 4)
    bound1 = 1.0 / jnp.sqrt(dim)
    bound2 = 1.0 / jnp.sqrt(hidden_dim)
    # Stored as (in, out) so the kernel does x @ W.
    w1 = jax.random.uniform(k1, (dim, hidden_dim), dtype, -bound1, bound1)
    b1 = jax.random.uniform(k2, (hidden_dim,), dtype, -bound1, bound1)
    w2 = jax.random.uniform(k3, (hidden_dim, dim), dtype, -bound2, bound2)
    b2 = jax.random.uniform(k4, (dim,), dtype, -bound2, bound2)
    return w1, b1, w2, b2


if __name__ == "__main__":
    key = jax.random.PRNGKey(0)
    kx, kp = jax.random.split(key)

    B, N, dim, hidden_dim = 2, 8, 32, 64
    x = jax.random.normal(kx, (B, N, dim), jnp.float32)
    w1, b1, w2, b2 = init_params(kp, dim, hidden_dim)

    # Reference in plain JAX (f32).
    ref = jnp.maximum(x @ w1 + b1, 0.0) @ w2 + b2

    # Exact f32 MXU path (tight tolerance).
    out_f32 = jax.block_until_ready(
        feed_forward(x, w1, b1, w2, b2, compute_dtype=jnp.float32))
    assert out_f32.shape == (B, N, dim)
    assert jnp.allclose(out_f32, ref, atol=1e-5, rtol=1e-5), "f32 mismatch vs reference"

    # Default bf16 MXU path (f32 accumulation), with pre-cast weights; loose tolerance.
    w1c, b1c, w2c, b2c = prepare_params(w1, b1, w2, b2)
    out_bf = jax.block_until_ready(feed_forward(x, w1c, b1c, w2c, b2c))
    assert jnp.allclose(out_bf, ref, atol=5e-2, rtol=5e-2), "bf16 mismatch vs reference"

    # Ragged row count (exercises ceil-div grid + clipped writeback), exact f32.
    x_r = x.reshape(B * N, dim)[:13]
    out_r = jax.block_until_ready(
        feed_forward(x_r, w1, b1, w2, b2, compute_dtype=jnp.float32))
    ref_r = ref.reshape(B * N, dim)[:13]
    assert out_r.shape == (13, dim)
    assert jnp.allclose(out_r, ref_r, atol=1e-5, rtol=1e-5), "ragged-M mismatch vs reference"

    # bf16-resident activations exercise the scratch-accumulator (non-f32 output) variant.
    x_bf = x.astype(jnp.bfloat16)
    out_bfx = jax.block_until_ready(feed_forward(x_bf, w1c, b1c, w2c, b2c))
    assert out_bfx.dtype == jnp.bfloat16
    assert jnp.allclose(out_bfx.astype(jnp.float32), ref, atol=1e-1, rtol=1e-1), \
        "bf16-activation mismatch vs reference"

    print("KERNEL_OK")
</pallas_src>

<mosaic_0001>
module attributes {stable_mosaic.version = 11 : i64} {
  func.func @_ffn_kernel_acc_out(%arg0: i32, %arg1: i32, %arg2: memref<16x128xf32, #tpu.memory_space<vmem>>, %arg3: memref<128x128xf32, #tpu.memory_space<vmem>>, %arg4: memref<1x128xf32, #tpu.memory_space<vmem>>, %arg5: memref<128x128xf32, #tpu.memory_space<vmem>>, %arg6: memref<1x128xf32, #tpu.memory_space<vmem>>, %arg7: memref<16x128xf32, #tpu.memory_space<vmem>>) attributes {dimension_semantics = [#tpu.dimension_semantics<parallel>, #tpu.dimension_semantics<arbitrary>], iteration_bounds = array<i64: 1, 1>, scalar_prefetch = 0 : i64, scratch_operands = 0 : i64, tpu.core_type = #tpu.core_type<tc>, window_params = [{transform_indices = @transform_0, window_bounds = array<i64: 16, 128>}, {transform_indices = @transform_1, window_bounds = array<i64: 128, 128>}, {transform_indices = @transform_2, window_bounds = array<i64: 1, 128>}, {transform_indices = @transform_3, window_bounds = array<i64: 128, 128>}, {pipeline_mode = #tpu.pipeline_mode<synchronous>, transform_indices = @transform_4, window_bounds = array<i64: 1, 128>}, {transform_indices = @transform_5, window_bounds = array<i64: 16, 128>}]} {
    %c0_i32 = arith.constant 0 : i32
    %0 = arith.cmpi eq, %arg1, %c0_i32 : i32
    %1 = arith.extui %0 : i1 to i32
    %c0_i32_0 = arith.constant 0 : i32
    %2 = arith.cmpi ne, %1, %c0_i32_0 : i32
    scf.if %2 {
      %c0_14 = arith.constant 0 : index
      %c0_15 = arith.constant 0 : index
      %16 = vector.load %arg6[%c0_14, %c0_15] : memref<1x128xf32, #tpu.memory_space<vmem>>, vector<1x128xf32>
      %17 = vector.shape_cast %16 : vector<1x128xf32> to vector<1x128xf32>
      %18 = vector.broadcast %17 : vector<1x128xf32> to vector<16x128xf32>
      %c0_16 = arith.constant 0 : index
      %c0_17 = arith.constant 0 : index
      %19 = vector.load %arg7[%c0_16, %c0_17] : memref<16x128xf32, #tpu.memory_space<vmem>>, vector<16x128xf32>
      tpu.vector_store %arg7[%c0_16, %c0_17], %18 {strides = array<i32>} : memref<16x128xf32, #tpu.memory_space<vmem>>, vector<16x128xf32>,
    } else {
    }
    %c0 = arith.constant 0 : index
    %c0_1 = arith.constant 0 : index
    %3 = vector.load %arg2[%c0, %c0_1] : memref<16x128xf32, #tpu.memory_space<vmem>>, vector<16x128xf32>
    %c0_2 = arith.constant 0 : index
    %c0_3 = arith.constant 0 : index
    %4 = vector.load %arg3[%c0_2, %c0_3] : memref<128x128xf32, #tpu.memory_space<vmem>>, vector<128x128xf32>
    %cst = arith.constant dense<0.000000e+00> : vector<16x128xf32>
    %5 = tpu.matmul %3, %4, %cst {dimension_numbers = #tpu.dot_dimension_numbers<[1], [0], [0], [1], [0, 0, 1, 1], [], []>} : vector<16x128xf32>, vector<128x128xf32>, vector<16x128xf32> -> vector<16x128xf32>
    %c0_4 = arith.constant 0 : index
    %c0_5 = arith.constant 0 : index
    %6 = vector.load %arg4[%c0_4, %c0_5] : memref<1x128xf32, #tpu.memory_space<vmem>>, vector<1x128xf32>
    %7 = vector.broadcast %6 : vector<1x128xf32> to vector<16x128xf32>
    %8 = arith.addf %5, %7 : vector<16x128xf32>
    %cst_6 = arith.constant 0.000000e+00 : f32
    %9 = vector.broadcast %cst_6 : f32 to vector<16x128xf32>
    %10 = arith.maximumf %8, %9 : vector<16x128xf32>
    %c0_7 = arith.constant 0 : index
    %c0_8 = arith.constant 0 : index
    %11 = vector.load %arg7[%c0_7, %c0_8] : memref<16x128xf32, #tpu.memory_space<vmem>>, vector<16x128xf32>
    %c0_9 = arith.constant 0 : index
    %c0_10 = arith.constant 0 : index
    %12 = vector.load %arg5[%c0_9, %c0_10] : memref<128x128xf32, #tpu.memory_space<vmem>>, vector<128x128xf32>
    %cst_11 = arith.constant dense<0.000000e+00> : vector<16x128xf32>
    %13 = tpu.matmul %10, %12, %cst_11 {dimension_numbers = #tpu.dot_dimension_numbers<[1], [0], [0], [1], [0, 0, 1, 1], [], []>} : vector<16x128xf32>, vector<128x128xf32>, vector<16x128xf32> -> vector<16x128xf32>
    %14 = arith.addf %11, %13 : vector<16x128xf32>
    %c0_12 = arith.constant 0 : index
    %c0_13 = arith.constant 0 : index
    %15 = vector.load %arg7[%c0_12, %c0_13] : memref<16x128xf32, #tpu.memory_space<vmem>>, vector<16x128xf32>
    tpu.vector_store %arg7[%c0_12, %c0_13], %14 {strides = array<i32>} : memref<16x128xf32, #tpu.memory_space<vmem>>, vector<16x128xf32>,
    return
  }
  func.func @transform_0(%arg0: i32, %arg1: i32) -> (i32, i32) {
    %c0_i32 = arith.constant 0 : i32
    %c0_i32_0 = arith.constant 0 : i32
    return %arg0, %c0_i32 : i32, i32
  }
  func.func @transform_1(%arg0: i32, %arg1: i32) -> (i32, i32) {
    %c0_i32 = arith.constant 0 : i32
    %c0_i32_0 = arith.constant 0 : i32
    return %c0_i32, %arg1 : i32, i32
  }
  func.func @transform_2(%arg0: i32, %arg1: i32) -> (i32, i32) {
    %c0_i32 = arith.constant 0 : i32
    %c0_i32_0 = arith.constant 0 : i32
    return %c0_i32, %arg1 : i32, i32
  }
  func.func @transform_3(%arg0: i32, %arg1: i32) -> (i32, i32) {
    %c0_i32 = arith.constant 0 : i32
    %c0_i32_0 = arith.constant 0 : i32
    return %arg1, %c0_i32 : i32, i32
  }
  func.func @transform_4(%arg0: i32, %arg1: i32) -> (i32, i32) {
    %c0_i32 = arith.constant 0 : i32
    %c0_i32_0 = arith.constant 0 : i32
    %c0_i32_1 = arith.constant 0 : i32
    return %c0_i32, %c0_i32_0 : i32, i32
  }
  func.func @transform_5(%arg0: i32, %arg1: i32) -> (i32, i32) {
    %c0_i32 = arith.constant 0 : i32
    %c0_i32_0 = arith.constant 0 : i32
    return %arg0, %c0_i32 : i32, i32
  }
}

</mosaic_0001>

<llo_original>
// kernel: feed_forward.1
$region0: #{feed_forward.1}
  #allocation0 [shape = 'u32[]', space=smem, size = 0x4, offset = 0x4, fixed_abs, tag = 'smem constant byte address 0x4 - core index']
  #allocation1 [shape = 'u32[144,128]{1,0:T(1,128)}', space=vmem, size = 0x12000, scoped, tag = 'internal scratch']
  %s0 = inlined_call_operand.vmem [shape: f32[16,128], index: 0, kind: input, shape index: {}]
  %s1 = inlined_call_operand.vmem [shape: f32[128,128], index: 1, kind: input, shape index: {}]
  %s2 = inlined_call_operand.vmem [shape: f32[1,128], index: 2, kind: input, shape index: {}]
  %s3 = inlined_call_operand.vmem [shape: f32[128,128], index: 3, kind: input, shape index: {}]
  %s4 = inlined_call_operand.vmem [shape: f32[1,128], index: 4, kind: input, shape index: {}]
  %s5 = inlined_call_operand.vmem [shape: f32[16,128], index: 5, kind: output, shape index: {}]
  %s6 = sld [smem:[#allocation0]]
  $region34: #{feed_forward.1} parent=0
    _
  %s8 = ssub.s32 1, %s6
  %s9 = scalar_select 0, %s8, %s6
  // Predicated region
  $region2: #{feed_forward.1} parent=0 // pred_check
    _
  $region3: #{feed_forward.1} parent=0 // pred_check_branch
    %11 = sbr.rel (0) target = $region5
  $region4: #{feed_forward.1} parent=0 // pred_region
    _
  $region5: #{feed_forward.1} parent=0 // pred_fallthru
    _
  // Predicated region
  $region6: #{feed_forward.1} parent=0 // pred_check
    _
  $region7: #{feed_forward.1} parent=0 // pred_check_branch
    %13 = sbr.rel (0) target = $region9
  $region8: #{feed_forward.1} parent=0 // pred_region
    _
  $region9: #{feed_forward.1} parent=0 // pred_fallthru
    _
  // Predicated region
  $region10: #{feed_forward.1} parent=0 // pred_check
    _
  $region11: #{feed_forward.1} parent=0 // pred_check_branch
    %15 = sbr.rel (0) target = $region13
  $region12: #{feed_forward.1} parent=0 // pred_region
    _
  $region13: #{feed_forward.1} parent=0 // pred_fallthru
    _
  // Predicated region
  $region14: #{feed_forward.1} parent=0 // pred_check
    _
  $region15: #{feed_forward.1} parent=0 // pred_check_branch
    %17 = sbr.rel (0) target = $region17
  $region16: #{feed_forward.1} parent=0 // pred_region
    _
  $region17: #{feed_forward.1} parent=0 // pred_fallthru
    _
  // Predicated region
  $region18: #{feed_forward.1} parent=0 // pred_check
    _
  $region19: #{feed_forward.1} parent=0 // pred_check_branch
    %19 = sbr.rel (0) target = $region21
  $region20: #{feed_forward.1} parent=0 // pred_region
    _
  $region21: #{feed_forward.1} parent=0 // pred_fallthru
    _
  %p20 = scmp.eq.s32.totalorder 0, 0
  // Predicated region
  $region22: #{feed_forward.1} parent=0 // pred_check
    %p21 = pneg %p20
  $region23: #{feed_forward.1} parent=0 // pred_check_branch
    %23 = sbr.rel (%p21) target = $region25
  $region24: #{feed_forward.1} parent=0 // pred_region
    %v24 = vld [vmem:[%s4] sm:$0x1]
    %v26 = vlaneseq
    %v27 = vshrl.u32 %v26, 7
    %v28 = vsub.s32 0, %v27
    %v29 = vrot.slane %v24, %v28
    %31 = vst [vmem:[%s5] sm:$0xff] %v29
    %32 = vst [vmem:[%s5 + $0x8] sm:$0xff] %v29
  $region25: #{feed_forward.1} parent=0 // pred_fallthru
    _
  %v33 = vld [vmem:[%s0] sm:$0xff]
  %v34 = vld [vmem:[%s0 + $0x8] sm:$0xff]
  %v35 = vld [vmem:[%s1] sm:$0xff]
  %v36 = vld [vmem:[%s1 + $0x8] sm:$0xff]
  %v37 = vld [vmem:[%s1 + $0x10] sm:$0xff]
  %v38 = vld [vmem:[%s1 + $0x18] sm:$0xff]
  %v39 = vld [vmem:[%s1 + $0x20] sm:$0xff]
  %v40 = vld [vmem:[%s1 + $0x28] sm:$0xff]
  %v41 = vld [vmem:[%s1 + $0x30] sm:$0xff]
  %v42 = vld [vmem:[%s1 + $0x38] sm:$0xff]
  %v43 = vld [vmem:[%s1 + $0x40] sm:$0xff]
  %v44 = vld [vmem:[%s1 + $0x48] sm:$0xff]
  %v45 = vld [vmem:[%s1 + $0x50] sm:$0xff]
  %v46 = vld [vmem:[%s1 + $0x58] sm:$0xff]
  %v47 = vld [vmem:[%s1 + $0x60] sm:$0xff]
  %v48 = vld [vmem:[%s1 + $0x68] sm:$0xff]
  %v49 = vld [vmem:[%s1 + $0x70] sm:$0xff]
  %v50 = vld [vmem:[%s1 + $0x78] sm:$0xff]
  %v51 = vld [vmem:[%s2] sm:$0x1]
  %v53 = vlaneseq
  %v54 = vshrl.u32 %v53, 7
  %v55 = vsub.s32 0, %v54
  %v56 = vrot.slane %v51, %v55
  %58 = vmatprep.subr.mxu0 0.0
  %59 = vmatpush1.msra.mxu0 %v50
  %60 = vmatprep.subr.mxu0 0.0
  %61 = vmatpush1.msra.mxu0 %v49
  %62 = vmatprep.subr.mxu0 0.0
  %63 = vmatpush1.msra.mxu0 %v48
  %64 = vmatprep.subr.mxu0 0.0
  %65 = vmatpush1.msra.mxu0 %v47
  %66 = vmatprep.subr.mxu0 0.0
  %67 = vmatpush1.msra.mxu0 %v46
  %68 = vmatprep.subr.mxu0 0.0
  %69 = vmatpush1.msra.mxu0 %v45
  %70 = vmatprep.subr.mxu0 0.0
  %71 = vmatpush1.msra.mxu0 %v44
  %72 = vmatprep.subr.mxu0 0.0
  %73 = vmatpush1.msra.mxu0 %v43
  %74 = vmatprep.subr.mxu0 0.0
  %75 = vmatpush1.msra.mxu0 %v42
  %76 = vmatprep.subr.mxu0 0.0
  %77 = vmatpush1.msra.mxu0 %v41
  %78 = vmatprep.subr.mxu0 0.0
  %79 = vmatpush1.msra.mxu0 %v40
  %80 = vmatprep.subr.mxu0 0.0
  %81 = vmatpush1.msra.mxu0 %v39
  %82 = vmatprep.subr.mxu0 0.0
  %83 = vmatpush1.msra.mxu0 %v38
  %84 = vmatprep.subr.mxu0 0.0
  %85 = vmatpush1.msra.mxu0 %v37
  %86 = vmatprep.subr.mxu0 0.0
  %87 = vmatpush1.msra.mxu0 %v36
  %88 = vmatprep.subr.mxu0 0.0
  %89 = vmatpush1.msra.mxu0 %v35
  %90 = vmatprep.subr.mxu0 0.0
  %91 = vmatpush2.msra.mxu0 0.0
  %92 = vmatprep.subr.mxu0 0.0
  %93 = vmatpush2.msra.mxu0 0.0
  %94 = vmatprep.subr.mxu0 0.0
  %95 = vmatpush2.msra.mxu0 0.0
  %96 = vmatprep.subr.mxu0 0.0
  %97 = vmatpush2.msra.mxu0 0.0
  %98 = vmatprep.subr.mxu0 0.0
  %99 = vmatpush2.msra.mxu0 0.0
  %100 = vmatprep.subr.mxu0 0.0
  %101 = vmatpush2.msra.mxu0 0.0
  %102 = vmatprep.subr.mxu0 0.0
  %103 = vmatpush2.msra.mxu0 0.0
  %104 = vmatprep.subr.mxu0 0.0
  %105 = vmatpush2.msra.mxu0 0.0
  %106 = vmatprep.subr.mxu0 0.0
  %107 = vmatpush2.msra.mxu0 0.0
  %108 = vmatprep.subr.mxu0 0.0
  %109 = vmatpush2.msra.mxu0 0.0
  %110 = vmatprep.subr.mxu0 0.0
  %111 = vmatpush2.msra.mxu0 0.0
  %112 = vmatprep.subr.mxu0 0.0
  %113 = vmatpush2.msra.mxu0 0.0
  %114 = vmatprep.subr.mxu0 0.0
  %115 = vmatpush2.msra.mxu0 0.0
  %116 = vmatprep.subr.mxu0 0.0
  %117 = vmatpush2.msra.mxu0 0.0
  %118 = vmatprep.subr.mxu0 0.0
  %119 = vmatpush2.msra.mxu0 0.0
  %120 = vmatprep.subr.mxu0 0.0
  %121 = vmatpush2.msra.mxu0 0.0
  %122 = vmatprep.mubr.f32.mxu0 0.0
  %123 = vmatmul.mubr.f32.gmra.mxu0 %v33
  %v124 = vpop.f32.mrf.mxu0
  %v125 = vadd.f32 %v56, %v124
  %v126 = vpop.f32.mrf.mxu0
  %127 = vmatprep.mubr.f32.mxu0 0.0
  %128 = vmatmul.mubr.f32.gmra.mxu0 %v34
  %v129 = vpop.f32.mrf.mxu0
  %v130 = vadd.f32 %v56, %v129
  %v131 = vpop.f32.mrf.mxu0
  %132 = vdwg.mxu0
  %v133 = vmax.f32 %v125, 0.0
  %v134 = vmax.f32 %v130, 0.0
  %v135 = vld [vmem:[%s5] sm:$0xff]
  %v136 = vld [vmem:[%s5 + $0x8] sm:$0xff]
  %v137 = vld [vmem:[%s3] sm:$0xff]
  %v138 = vld [vmem:[%s3 + $0x8] sm:$0xff]
  %v139 = vld [vmem:[%s3 + $0x10] sm:$0xff]
  %v140 = vld [vmem:[%s3 + $0x18] sm:$0xff]
  %v141 = vld [vmem:[%s3 + $0x20] sm:$0xff]
  %v142 = vld [vmem:[%s3 + $0x28] sm:$0xff]
  %v143 = vld [vmem:[%s3 + $0x30] sm:$0xff]
  %v144 = vld [vmem:[%s3 + $0x38] sm:$0xff]
  %v145 = vld [vmem:[%s3 + $0x40] sm:$0xff]
  %v146 = vld [vmem:[%s3 + $0x48] sm:$0xff]
  %v147 = vld [vmem:[%s3 + $0x50] sm:$0xff]
  %v148 = vld [vmem:[%s3 + $0x58] sm:$0xff]
  %v149 = vld [vmem:[%s3 + $0x60] sm:$0xff]
  %v150 = vld [vmem:[%s3 + $0x68] sm:$0xff]
  %v151 = vld [vmem:[%s3 + $0x70] sm:$0xff]
  %v152 = vld [vmem:[%s3 + $0x78] sm:$0xff]
  %153 = vmatprep.subr.mxu0 0.0
  %154 = vmatpush1.msra.mxu0 %v152
  %155 = vmatprep.subr.mxu0 0.0
  %156 = vmatpush1.msra.mxu0 %v151
  %157 = vmatprep.subr.mxu0 0.0
  %158 = vmatpush1.msra.mxu0 %v150
  %159 = vmatprep.subr.mxu0 0.0
  %160 = vmatpush1.msra.mxu0 %v149
  %161 = vmatprep.subr.mxu0 0.0
  %162 = vmatpush1.msra.mxu0 %v148
  %163 = vmatprep.subr.mxu0 0.0
  %164 = vmatpush1.msra.mxu0 %v147
  %165 = vmatprep.subr.mxu0 0.0
  %166 = vmatpush1.msra.mxu0 %v146
  %167 = vmatprep.subr.mxu0 0.0
  %168 = vmatpush1.msra.mxu0 %v145
  %169 = vmatprep.subr.mxu0 0.0
  %170 = vmatpush1.msra.mxu0 %v144
  %171 = vmatprep.subr.mxu0 0.0
  %172 = vmatpush1.msra.mxu0 %v143
  %173 = vmatprep.subr.mxu0 0.0
  %174 = vmatpush1.msra.mxu0 %v142
  %175 = vmatprep.subr.mxu0 0.0
  %176 = vmatpush1.msra.mxu0 %v141
  %177 = vmatprep.subr.mxu0 0.0
  %178 = vmatpush1.msra.mxu0 %v140
  %179 = vmatprep.subr.mxu0 0.0
  %180 = vmatpush1.msra.mxu0 %v139
  %181 = vmatprep.subr.mxu0 0.0
  %182 = vmatpush1.msra.mxu0 %v138
  %183 = vmatprep.subr.mxu0 0.0
  %184 = vmatpush1.msra.mxu0 %v137
  %185 = vmatprep.subr.mxu0 0.0
  %186 = vmatpush2.msra.mxu0 0.0
  %187 = vmatprep.subr.mxu0 0.0
  %188 = vmatpush2.msra.mxu0 0.0
  %189 = vmatprep.subr.mxu0 0.0
  %190 = vmatpush2.msra.mxu0 0.0
  %191 = vmatprep.subr.mxu0 0.0
  %192 = vmatpush2.msra.mxu0 0.0
  %193 = vmatprep.subr.mxu0 0.0
  %194 = vmatpush2.msra.mxu0 0.0
  %195 = vmatprep.subr.mxu0 0.0
  %196 = vmatpush2.msra.mxu0 0.0
  %197 = vmatprep.subr.mxu0 0.0
  %198 = vmatpush2.msra.mxu0 0.0
  %199 = vmatprep.subr.mxu0 0.0
  %200 = vmatpush2.msra.mxu0 0.0
  %201 = vmatprep.subr.mxu0 0.0
  %202 = vmatpush2.msra.mxu0 0.0
  %203 = vmatprep.subr.mxu0 0.0
  %204 = vmatpush2.msra.mxu0 0.0
  %205 = vmatprep.subr.mxu0 0.0
  %206 = vmatpush2.msra.mxu0 0.0
  %207 = vmatprep.subr.mxu0 0.0
  %208 = vmatpush2.msra.mxu0 0.0
  %209 = vmatprep.subr.mxu0 0.0
  %210 = vmatpush2.msra.mxu0 0.0
  %211 = vmatprep.subr.mxu0 0.0
  %212 = vmatpush2.msra.mxu0 0.0
  %213 = vmatprep.subr.mxu0 0.0
  %214 = vmatpush2.msra.mxu0 0.0
  %215 = vmatprep.subr.mxu0 0.0
  %216 = vmatpush2.msra.mxu0 0.0
  %217 = vmatprep.mubr.f32.mxu0 0.0
  %218 = vmatmul.mubr.f32.gmra.mxu0 %v133
  %v219 = vpop.f32.mrf.mxu0
  %v220 = vadd.f32 0.0, %v219
  %v221 = vpop.f32.mrf.mxu0
  %222 = vmatprep.mubr.f32.mxu0 0.0
  %223 = vmatmul.mubr.f32.gmra.mxu0 %v134
  %v224 = vpop.f32.mrf.mxu0
  %v225 = vadd.f32 0.0, %v224
  %v226 = vpop.f32.mrf.mxu0
  %227 = vdwg.mxu0
  %v228 = vadd.f32 %v135, %v220
  %v229 = vadd.f32 %v136, %v225
  %230 = vst [vmem:[%s5] sm:$0xff] %v228
  %231 = vst [vmem:[%s5 + $0x8] sm:$0xff] %v229
  // Predicated region
  $region26: #{feed_forward.1} parent=0 // pred_check
    _
  $region27: #{feed_forward.1} parent=0 // pred_check_branch
    %233 = sbr.rel (0) target = $region29
  $region28: #{feed_forward.1} parent=0 // pred_region
    _
  $region29: #{feed_forward.1} parent=0 // pred_fallthru
    _
  // Predicated region
  $region30: #{feed_forward.1} parent=0 // pred_check
    _
  $region31: #{feed_forward.1} parent=0 // pred_check_branch
    %235 = sbr.rel (0) target = $region33
  $region32: #{feed_forward.1} parent=0 // pred_region
    _
  $region33: #{feed_forward.1} parent=0 // pred_fallthru
    _

</llo_original>
